<compile_context>
chip_gen: v7x
topology: tpu7x:2x2x1
jax: 0.10.0
libtpu: 0.0.40
codegen_flags: <defaults>
</compile_context>

<pallas_src>
import jax
import jax.numpy as jnp
from jax import lax
from jax.experimental import pallas as pl
from jax.experimental.pallas import tpu as pltpu


def _round_up(x, m):
    return (x + m - 1) // m * m


def _lin2_kernel(x2_ref, x1_ref, w2_ref, w1_ref, b_ref, o_ref):
    # Contract activation's last dim with the weight's last dim (in_ch) —
    # i.e. x @ W.T without ever transposing W.
    dn = (((1,), (1,)), ((), ()))
    acc = lax.dot_general(x2_ref[...], w2_ref[...], dn,
                          preferred_element_type=jnp.float32)
    acc = acc + lax.dot_general(x1_ref[...], w1_ref[...], dn,
                                preferred_element_type=jnp.float32)
    # f32 epilogue (bias add), cast only at the store.
    o_ref[...] = (acc + b_ref[...]).astype(o_ref.dtype)


def lin2_forward(x1, x2, weight, bias):
    """Pallas implementation of lin2.forward.

    x1:     (B, F1)            float32
    x2:     (B, C, H, W)       float32 (NCHW; flattened row-major like torch.view)
    weight: (out_ch, in_ch)    float32 (PyTorch nn.Linear layout, in_ch = F2 + F1)
    bias:   (out_ch,)          float32
    """
    B = x1.shape[0]
    F1 = x1.shape[1]
    x2_flat = x2.reshape(B, -1)                  # (B, F2) — no concat afterwards
    F2 = x2_flat.shape[1]
    out_ch, in_ch = weight.shape
    assert in_ch == F1 + F2

    # --- layout plumbing (cheap, amortized / constant-foldable under jit) ---
    # Split the weight along in_ch so the concat can be fused into two dots.
    w2 = weight[:, :F2]                          # (out_ch, F2)
    w1 = weight[:, F2:]                          # (out_ch, F1)

    # Lane-dense output: pad out_ch to a multiple of 128.
    out_pad = _round_up(out_ch, 128)
    if out_pad != out_ch:
        pad_n = out_pad - out_ch
        w2 = jnp.pad(w2, ((0, pad_n), (0, 0)))
        w1 = jnp.pad(w1, ((0, pad_n), (0, 0)))
        b2d = jnp.pad(bias, (0, pad_n)).reshape(1, out_pad)
    else:
        b2d = bias.reshape(1, out_pad)

    # Batch tiling: TM multiple of 8, pipelined/parallel grid over batch.
    TM = min(256, _round_up(B, 8))
    B_pad = _round_up(B, TM)
    if B_pad != B:
        pad_b = B_pad - B
        x1_p = jnp.pad(x1, ((0, pad_b), (0, 0)))
        x2_p = jnp.pad(x2_flat, ((0, pad_b), (0, 0)))
    else:
        x1_p, x2_p = x1, x2_flat

    grid = (B_pad // TM,)

    y_pad = pl.pallas_call(
        _lin2_kernel,
        out_shape=jax.ShapeDtypeStruct((B_pad, out_pad), x1.dtype),
        grid=grid,
        in_specs=[
            pl.BlockSpec((TM, F2), lambda i: (i, 0)),        # x2_flat tile
            pl.BlockSpec((TM, F1), lambda i: (i, 0)),        # x1 tile
            pl.BlockSpec((out_pad, F2), lambda i: (0, 0)),   # W[:, :F2] (resident)
            pl.BlockSpec((out_pad, F1), lambda i: (0, 0)),   # W[:, F2:] (resident)
            pl.BlockSpec((1, out_pad), lambda i: (0, 0)),    # bias (resident)
        ],
        out_specs=pl.BlockSpec((TM, out_pad), lambda i: (i, 0)),
        compiler_params=pltpu.CompilerParams(
            dimension_semantics=("parallel",),               # shard batch on v7x's 2 TCs
        ),
    )(x2_p, x1_p, w2, w1, b2d)

    # Strip batch / lane padding.
    return y_pad[:B, :out_ch]


if __name__ == "__main__":
    key = jax.random.PRNGKey(0)
    k1, k2, kw, kb = jax.random.split(key, 4)

    # Small shapes consistent with the forward:
    #   x2 (B, C, H, W) flattens to F2 = C*H*W; x1 is (B, F1); in_ch = F2 + F1.
    B, C, H, W = 2, 4, 4, 4          # F2 = 64
    F1 = 16                          # in_ch = 80
    in_ch = C * H * W + F1
    out_ch = 32

    x1 = jax.random.normal(k1, (B, F1), dtype=jnp.float32)
    x2 = jax.random.normal(k2, (B, C, H, W), dtype=jnp.float32)

    # Deterministic parameter init (PyTorch-style uniform bound 1/sqrt(in_ch)).
    bound = 1.0 / (in_ch ** 0.5)
    weight = jax.random.uniform(kw, (out_ch, in_ch), jnp.float32, -bound, bound)
    bias = jax.random.uniform(kb, (out_ch,), jnp.float32, -bound, bound)

    y = lin2_forward(x1, x2, weight, bias)
    jax.block_until_ready(y)

    # Reference check in plain JAX (same math as the PyTorch module).
    ref = jnp.concatenate([x2.reshape(B, -1), x1], axis=1) @ weight.T + bias
    assert y.shape == (B, out_ch)
    assert jnp.allclose(y, ref, atol=1e-5, rtol=1e-5)

    print("KERNEL_OK")
</pallas_src>

<mosaic_0001>
module attributes {stable_mosaic.version = 11 : i64} {
  func.func @_lin2_kernel(%arg0: i32, %arg1: memref<8x64xf32, #tpu.memory_space<vmem>>, %arg2: memref<8x16xf32, #tpu.memory_space<vmem>>, %arg3: memref<128x64xf32, #tpu.memory_space<vmem>>, %arg4: memref<128x16xf32, #tpu.memory_space<vmem>>, %arg5: memref<1x128xf32, #tpu.memory_space<vmem>>, %arg6: memref<8x128xf32, #tpu.memory_space<vmem>>) attributes {dimension_semantics = [#tpu.dimension_semantics<parallel>], iteration_bounds = array<i64: 1>, scalar_prefetch = 0 : i64, scratch_operands = 0 : i64, tpu.core_type = #tpu.core_type<tc>, window_params = [{transform_indices = @transform_0, window_bounds = array<i64: 8, 64>}, {transform_indices = @transform_1, window_bounds = array<i64: 8, 16>}, {pipeline_mode = #tpu.pipeline_mode<synchronous>, transform_indices = @transform_2, window_bounds = array<i64: 128, 64>}, {pipeline_mode = #tpu.pipeline_mode<synchronous>, transform_indices = @transform_3, window_bounds = array<i64: 128, 16>}, {pipeline_mode = #tpu.pipeline_mode<synchronous>, transform_indices = @transform_4, window_bounds = array<i64: 1, 128>}, {transform_indices = @transform_5, window_bounds = array<i64: 8, 128>}]} {
    %c0 = arith.constant 0 : index
    %c0_0 = arith.constant 0 : index
    %0 = vector.load %arg1[%c0, %c0_0] : memref<8x64xf32, #tpu.memory_space<vmem>>, vector<8x64xf32>
    %c0_1 = arith.constant 0 : index
    %c0_2 = arith.constant 0 : index
    %1 = vector.load %arg3[%c0_1, %c0_2] : memref<128x64xf32, #tpu.memory_space<vmem>>, vector<128x64xf32>
    %cst = arith.constant dense<0.000000e+00> : vector<8x128xf32>
    %2 = tpu.matmul %0, %1, %cst {dimension_numbers = #tpu.dot_dimension_numbers<[1], [1], [0], [0], [0, 0, 1, 0], [], []>} : vector<8x64xf32>, vector<128x64xf32>, vector<8x128xf32> -> vector<8x128xf32>
    %c0_3 = arith.constant 0 : index
    %c0_4 = arith.constant 0 : index
    %3 = vector.load %arg2[%c0_3, %c0_4] : memref<8x16xf32, #tpu.memory_space<vmem>>, vector<8x16xf32>
    %c0_5 = arith.constant 0 : index
    %c0_6 = arith.constant 0 : index
    %4 = vector.load %arg4[%c0_5, %c0_6] : memref<128x16xf32, #tpu.memory_space<vmem>>, vector<128x16xf32>
    %cst_7 = arith.constant dense<0.000000e+00> : vector<8x128xf32>
    %5 = tpu.matmul %3, %4, %cst_7 {dimension_numbers = #tpu.dot_dimension_numbers<[1], [1], [0], [0], [0, 0, 1, 0], [], []>} : vector<8x16xf32>, vector<128x16xf32>, vector<8x128xf32> -> vector<8x128xf32>
    %6 = arith.addf %2, %5 : vector<8x128xf32>
    %c0_8 = arith.constant 0 : index
    %c0_9 = arith.constant 0 : index
    %7 = vector.load %arg5[%c0_8, %c0_9] : memref<1x128xf32, #tpu.memory_space<vmem>>, vector<1x128xf32>
    %8 = vector.broadcast %7 : vector<1x128xf32> to vector<8x128xf32>
    %9 = arith.addf %6, %8 : vector<8x128xf32>
    %c0_10 = arith.constant 0 : index
    %c0_11 = arith.constant 0 : index
    %10 = vector.load %arg6[%c0_10, %c0_11] : memref<8x128xf32, #tpu.memory_space<vmem>>, vector<8x128xf32>
    tpu.vector_store %arg6[%c0_10, %c0_11], %9 {strides = array<i32>} : memref<8x128xf32, #tpu.memory_space<vmem>>, vector<8x128xf32>,
    return
  }
  func.func @transform_0(%arg0: i32) -> (i32, i32) {
    %c0_i32 = arith.constant 0 : i32
    %c0_i32_0 = arith.constant 0 : i32
    return %arg0, %c0_i32 : i32, i32
  }
  func.func @transform_1(%arg0: i32) -> (i32, i32) {
    %c0_i32 = arith.constant 0 : i32
    %c0_i32_0 = arith.constant 0 : i32
    return %arg0, %c0_i32 : i32, i32
  }
  func.func @transform_2(%arg0: i32) -> (i32, i32) {
    %c0_i32 = arith.constant 0 : i32
    %c0_i32_0 = arith.constant 0 : i32
    %c0_i32_1 = arith.constant 0 : i32
    return %c0_i32, %c0_i32_0 : i32, i32
  }
  func.func @transform_3(%arg0: i32) -> (i32, i32) {
    %c0_i32 = arith.constant 0 : i32
    %c0_i32_0 = arith.constant 0 : i32
    %c0_i32_1 = arith.constant 0 : i32
    return %c0_i32, %c0_i32_0 : i32, i32
  }
  func.func @transform_4(%arg0: i32) -> (i32, i32) {
    %c0_i32 = arith.constant 0 : i32
    %c0_i32_0 = arith.constant 0 : i32
    %c0_i32_1 = arith.constant 0 : i32
    return %c0_i32, %c0_i32_0 : i32, i32
  }
  func.func @transform_5(%arg0: i32) -> (i32, i32) {
    %c0_i32 = arith.constant 0 : i32
    %c0_i32_0 = arith.constant 0 : i32
    return %arg0, %c0_i32 : i32, i32
  }
}

</mosaic_0001>

<llo_original>
// kernel: tpu_custom_call.1
$region0: #{tpu_custom_call.1}
  #allocation0 [shape = 'u32[]', space=smem, size = 0x4, offset = 0x4, fixed_abs, tag = 'smem constant byte address 0x4 - core index']
  #allocation1 [shape = 'u32[144,128]{1,0:T(1,128)}', space=vmem, size = 0x12000, scoped, tag = 'internal scratch']
  %s0 = inlined_call_operand.vmem [shape: f32[8,64], index: 0, kind: input, shape index: {}]
  %s1 = inlined_call_operand.vmem [shape: f32[8,16], index: 1, kind: input, shape index: {}]
  %s2 = inlined_call_operand.vmem [shape: f32[128,64], index: 2, kind: input, shape index: {}]
  %s3 = inlined_call_operand.vmem [shape: f32[128,16], index: 3, kind: input, shape index: {}]
  %s4 = inlined_call_operand.vmem [shape: f32[1,128], index: 4, kind: input, shape index: {}]
  %s5 = inlined_call_operand.hbm [shape: f32[8,128], index: 5, kind: output, shape index: {}]
  %s6 = sld [smem:[#allocation0]]
  $region30: #{tpu_custom_call.1} parent=0
    _
  %s8 = ssub.s32 1, %s6
  %s9 = scalar_select 0, %s8, %s6
  $region1: #{tpu_custom_call.1} parent=0
    #allocation2 [shape = 'u8[4096]{0}', space=vmem, size = 0x1000, scoped, tag = 'output window, operand 0, single buffered']
    #allocation3 [shape = 's32[1]{0}', space=sflag, size = 0x4, scoped, tag = 'scoped memory for tpu_custom_call.1']
    %10 = vsyncpa [#allocation3], 0
    // Predicated region
    $region2: #{tpu_custom_call.1} parent=1 // pred_check
      _
    $region3: #{tpu_custom_call.1} parent=1 // pred_check_branch
      %12 = sbr.rel (0) target = $region5
    $region4: #{tpu_custom_call.1} parent=1 // pred_region
      _
    $region5: #{tpu_custom_call.1} parent=1 // pred_fallthru
      _
    // Predicated region
    $region6: #{tpu_custom_call.1} parent=1 // pred_check
      _
    $region7: #{tpu_custom_call.1} parent=1 // pred_check_branch
      %14 = sbr.rel (0) target = $region9
    $region8: #{tpu_custom_call.1} parent=1 // pred_region
      _
    $region9: #{tpu_custom_call.1} parent=1 // pred_fallthru
      _
    // Predicated region
    $region10: #{tpu_custom_call.1} parent=1 // pred_check
      _
    $region11: #{tpu_custom_call.1} parent=1 // pred_check_branch
      %16 = sbr.rel (0) target = $region13
    $region12: #{tpu_custom_call.1} parent=1 // pred_region
      _
    $region13: #{tpu_custom_call.1} parent=1 // pred_fallthru
      _
    // Predicated region
    $region14: #{tpu_custom_call.1} parent=1 // pred_check
      _
    $region15: #{tpu_custom_call.1} parent=1 // pred_check_branch
      %18 = sbr.rel (0) target = $region17
    $region16: #{tpu_custom_call.1} parent=1 // pred_region
      _
    $region17: #{tpu_custom_call.1} parent=1 // pred_fallthru
      _
    // Predicated region
    $region18: #{tpu_custom_call.1} parent=1 // pred_check
      _
    $region19: #{tpu_custom_call.1} parent=1 // pred_check_branch
      %20 = sbr.rel (0) target = $region21
    $region20: #{tpu_custom_call.1} parent=1 // pred_region
      _
    $region21: #{tpu_custom_call.1} parent=1 // pred_fallthru
      _
    %v21 = vld [vmem:[%s0] sm:$0xff]
    %v22 = vld [vmem:[%s2] sm:$0xff]
    %v23 = vld [vmem:[%s2 + $0x8] sm:$0xff]
    %v24 = vld [vmem:[%s2 + $0x10] sm:$0xff]
    %v25 = vld [vmem:[%s2 + $0x18] sm:$0xff]
    %v26 = vld [vmem:[%s2 + $0x20] sm:$0xff]
    %v27 = vld [vmem:[%s2 + $0x28] sm:$0xff]
    %v28 = vld [vmem:[%s2 + $0x30] sm:$0xff]
    %v29 = vld [vmem:[%s2 + $0x38] sm:$0xff]
    %v30 = vld [vmem:[%s2 + $0x40] sm:$0xff]
    %v31 = vld [vmem:[%s2 + $0x48] sm:$0xff]
    %v32 = vld [vmem:[%s2 + $0x50] sm:$0xff]
    %v33 = vld [vmem:[%s2 + $0x58] sm:$0xff]
    %v34 = vld [vmem:[%s2 + $0x60] sm:$0xff]
    %v35 = vld [vmem:[%s2 + $0x68] sm:$0xff]
    %v36 = vld [vmem:[%s2 + $0x70] sm:$0xff]
    %v37 = vld [vmem:[%s2 + $0x78] sm:$0xff]
    %v38 = vld [vmem:[%s1] sm:$0xff]
    %v39 = vld [vmem:[%s3] sm:$0xff]
    %v40 = vld [vmem:[%s3 + $0x8] sm:$0xff]
    %v41 = vld [vmem:[%s3 + $0x10] sm:$0xff]
    %v42 = vld [vmem:[%s3 + $0x18] sm:$0xff]
    %v43 = vld [vmem:[%s3 + $0x20] sm:$0xff]
    %v44 = vld [vmem:[%s3 + $0x28] sm:$0xff]
    %v45 = vld [vmem:[%s3 + $0x30] sm:$0xff]
    %v46 = vld [vmem:[%s3 + $0x38] sm:$0xff]
    %v47 = vld [vmem:[%s3 + $0x40] sm:$0xff]
    %v48 = vld [vmem:[%s3 + $0x48] sm:$0xff]
    %v49 = vld [vmem:[%s3 + $0x50] sm:$0xff]
    %v50 = vld [vmem:[%s3 + $0x58] sm:$0xff]
    %v51 = vld [vmem:[%s3 + $0x60] sm:$0xff]
    %v52 = vld [vmem:[%s3 + $0x68] sm:$0xff]
    %v53 = vld [vmem:[%s3 + $0x70] sm:$0xff]
    %v54 = vld [vmem:[%s3 + $0x78] sm:$0xff]
    %vm55 = vcmask 130048
    %v57 = vsel %vm55, %v38, 0
    %v60 = vsel %vm55, %v39, 0
    %v63 = vsel %vm55, %v40, 0
    %v66 = vsel %vm55, %v41, 0
    %v69 = vsel %vm55, %v42, 0
    %v72 = vsel %vm55, %v43, 0
    %v75 = vsel %vm55, %v44, 0
    %v78 = vsel %vm55, %v45, 0
    %v81 = vsel %vm55, %v46, 0
    %v84 = vsel %vm55, %v47, 0
    %v87 = vsel %vm55, %v48, 0
    %v90 = vsel %vm55, %v49, 0
    %v93 = vsel %vm55, %v50, 0
    %v96 = vsel %vm55, %v51, 0
    %v99 = vsel %vm55, %v52, 0
    %v102 = vsel %vm55, %v53, 0
    %v105 = vsel %vm55, %v54, 0
    %107 = vmatprep.subr.mxu0 0.0
    %108 = vmatpush1.xpose.msra.mxu0 %v60
    %109 = vmatprep.subr.mxu0 0.0
    %110 = vmatpush1.xpose.msra.mxu0 %v63
    %111 = vmatprep.subr.mxu0 0.0
    %112 = vmatpush1.xpose.msra.mxu0 %v66
    %113 = vmatprep.subr.mxu0 0.0
    %114 = vmatpush1.xpose.msra.mxu0 %v69
    %115 = vmatprep.subr.mxu0 0.0
    %116 = vmatpush1.xpose.msra.mxu0 %v72
    %117 = vmatprep.subr.mxu0 0.0
    %118 = vmatpush1.xpose.msra.mxu0 %v75
    %119 = vmatprep.subr.mxu0 0.0
    %120 = vmatpush1.xpose.msra.mxu0 %v78
    %121 = vmatprep.subr.mxu0 0.0
    %122 = vmatpush1.xpose.msra.mxu0 %v81
    %123 = vmatprep.subr.mxu0 0.0
    %124 = vmatpush1.xpose.msra.mxu0 %v84
    %125 = vmatprep.subr.mxu0 0.0
    %126 = vmatpush1.xpose.msra.mxu0 %v87
    %127 = vmatprep.subr.mxu0 0.0
    %128 = vmatpush1.xpose.msra.mxu0 %v90
    %129 = vmatprep.subr.mxu0 0.0
    %130 = vmatpush1.xpose.msra.mxu0 %v93
    %131 = vmatprep.subr.mxu0 0.0
    %132 = vmatpush1.xpose.msra.mxu0 %v96
    %133 = vmatprep.subr.mxu0 0.0
    %134 = vmatpush1.xpose.msra.mxu0 %v99
    %135 = vmatprep.subr.mxu0 0.0
    %136 = vmatpush1.xpose.msra.mxu0 %v102
    %137 = vmatprep.subr.mxu0 0.0
    %138 = vmatpush1.xpose.msra.mxu0 %v105
    %139 = vmatprep.subr.mxu0 0.0
    %140 = vmatpush1.xpose.msra.mxu0 0.0
    %141 = vmatprep.subr.mxu0 0.0
    %142 = vmatpush1.xpose.msra.mxu0 0.0
    %143 = vmatprep.subr.mxu0 0.0
    %144 = vmatpush1.xpose.msra.mxu0 0.0
    %145 = vmatprep.subr.mxu0 0.0
    %146 = vmatpush1.xpose.msra.mxu0 0.0
    %147 = vmatprep.subr.mxu0 0.0
    %148 = vmatpush1.xpose.msra.mxu0 0.0
    %149 = vmatprep.subr.mxu0 0.0
    %150 = vmatpush1.xpose.msra.mxu0 0.0
    %151 = vmatprep.subr.mxu0 0.0
    %152 = vmatpush1.xpose.msra.mxu0 0.0
    %153 = vmatprep.subr.mxu0 0.0
    %154 = vmatpush1.xpose.msra.mxu0 0.0
    %155 = vmatprep.subr.mxu0 0.0
    %156 = vmatpush1.xpose.msra.mxu0 0.0
    %157 = vmatprep.subr.mxu0 0.0
    %158 = vmatpush1.xpose.msra.mxu0 0.0
    %159 = vmatprep.subr.mxu0 0.0
    %160 = vmatpush1.xpose.msra.mxu0 0.0
    %161 = vmatprep.subr.mxu0 0.0
    %162 = vmatpush1.xpose.msra.mxu0 0.0
    %163 = vmatprep.subr.mxu0 0.0
    %164 = vmatpush1.xpose.msra.mxu0 0.0
    %165 = vmatprep.subr.mxu0 0.0
    %166 = vmatpush1.xpose.msra.mxu0 0.0
    %167 = vmatprep.subr.mxu0 0.0
    %168 = vmatpush1.xpose.msra.mxu0 0.0
    %169 = vmatprep.subr.mxu0 0.0
    %170 = vmatpush1.xpose.msra.mxu0 0.0
    %171 = vmatprep.mubr.f32.mxu0 0.0
    %172 = vmatmul.mubr.f32.gmra.mrb[0].mxu0 %v57
    %v173 = vpop.f32.mrb[0].mxu0
    %v174 = vadd.f32 0.0, %v173
    %v175 = vpop.f32.mrb[0].mxu0
    %176 = vdwg.mxu0
    %vm177 = vcmask 523264
    %v179 = vsel %vm177, %v21, 0
    %v182 = vsel %vm177, %v22, 0
    %v185 = vsel %vm177, %v23, 0
    %v188 = vsel %vm177, %v24, 0
    %v191 = vsel %vm177, %v25, 0
    %v194 = vsel %vm177, %v26, 0
    %v197 = vsel %vm177, %v27, 0
    %v200 = vsel %vm177, %v28, 0
    %v203 = vsel %vm177, %v29, 0
    %v206 = vsel %vm177, %v30, 0
    %v209 = vsel %vm177, %v31, 0
    %v212 = vsel %vm177, %v32, 0
    %v215 = vsel %vm177, %v33, 0
    %v218 = vsel %vm177, %v34, 0
    %v221 = vsel %vm177, %v35, 0
    %v224 = vsel %vm177, %v36, 0
    %v227 = vsel %vm177, %v37, 0
    %229 = vmatprep.subr.mxu0 0.0
    %230 = vmatpush1.xpose.msra.mxu0 %v182
    %231 = vmatprep.subr.mxu0 0.0
    %232 = vmatpush1.xpose.msra.mxu0 %v185
    %233 = vmatprep.subr.mxu0 0.0
    %234 = vmatpush1.xpose.msra.mxu0 %v188
    %235 = vmatprep.subr.mxu0 0.0
    %236 = vmatpush1.xpose.msra.mxu0 %v191
    %237 = vmatprep.subr.mxu0 0.0
    %238 = vmatpush1.xpose.msra.mxu0 %v194
    %239 = vmatprep.subr.mxu0 0.0
    %240 = vmatpush1.xpose.msra.mxu0 %v197
    %241 = vmatprep.subr.mxu0 0.0
    %242 = vmatpush1.xpose.msra.mxu0 %v200
    %243 = vmatprep.subr.mxu0 0.0
    %244 = vmatpush1.xpose.msra.mxu0 %v203
    %245 = vmatprep.subr.mxu0 0.0
    %246 = vmatpush1.xpose.msra.mxu0 %v206
    %247 = vmatprep.subr.mxu0 0.0
    %248 = vmatpush1.xpose.msra.mxu0 %v209
    %249 = vmatprep.subr.mxu0 0.0
    %250 = vmatpush1.xpose.msra.mxu0 %v212
    %251 = vmatprep.subr.mxu0 0.0
    %252 = vmatpush1.xpose.msra.mxu0 %v215
    %253 = vmatprep.subr.mxu0 0.0
    %254 = vmatpush1.xpose.msra.mxu0 %v218
    %255 = vmatprep.subr.mxu0 0.0
    %256 = vmatpush1.xpose.msra.mxu0 %v221
    %257 = vmatprep.subr.mxu0 0.0
    %258 = vmatpush1.xpose.msra.mxu0 %v224
    %259 = vmatprep.subr.mxu0 0.0
    %260 = vmatpush1.xpose.msra.mxu0 %v227
    %261 = vmatprep.subr.mxu0 0.0
    %262 = vmatpush1.xpose.msra.mxu0 0.0
    %263 = vmatprep.subr.mxu0 0.0
    %264 = vmatpush1.xpose.msra.mxu0 0.0
    %265 = vmatprep.subr.mxu0 0.0
    %266 = vmatpush1.xpose.msra.mxu0 0.0
    %267 = vmatprep.subr.mxu0 0.0
    %268 = vmatpush1.xpose.msra.mxu0 0.0
    %269 = vmatprep.subr.mxu0 0.0
    %270 = vmatpush1.xpose.msra.mxu0 0.0
    %271 = vmatprep.subr.mxu0 0.0
    %272 = vmatpush1.xpose.msra.mxu0 0.0
    %273 = vmatprep.subr.mxu0 0.0
    %274 = vmatpush1.xpose.msra.mxu0 0.0
    %275 = vmatprep.subr.mxu0 0.0
    %276 = vmatpush1.xpose.msra.mxu0 0.0
    %277 = vmatprep.subr.mxu0 0.0
    %278 = vmatpush1.xpose.msra.mxu0 0.0
    %279 = vmatprep.subr.mxu0 0.0
    %280 = vmatpush1.xpose.msra.mxu0 0.0
    %281 = vmatprep.subr.mxu0 0.0
    %282 = vmatpush1.xpose.msra.mxu0 0.0
    %283 = vmatprep.subr.mxu0 0.0
    %284 = vmatpush1.xpose.msra.mxu0 0.0
    %285 = vmatprep.subr.mxu0 0.0
    %286 = vmatpush1.xpose.msra.mxu0 0.0
    %287 = vmatprep.subr.mxu0 0.0
    %288 = vmatpush1.xpose.msra.mxu0 0.0
    %289 = vmatprep.subr.mxu0 0.0
    %290 = vmatpush1.xpose.msra.mxu0 0.0
    %291 = vmatprep.subr.mxu0 0.0
    %292 = vmatpush1.xpose.msra.mxu0 0.0
    %293 = vmatprep.mubr.f32.mxu0 0.0
    %294 = vmatmul.mubr.f32.gmra.mrb[0].mxu0 %v179
    %v295 = vpop.f32.mrb[0].mxu0
    %v296 = vadd.f32 %v174, %v295
    %v297 = vpop.f32.mrb[0].mxu0
    %298 = vdwg.mxu0
    %v299 = vld [vmem:[%s4] sm:$0x1]
    %v301 = vlaneseq
    %v302 = vshrl.u32 %v301, 7
    %v303 = vsub.s32 0, %v302
    %v304 = vrot.slane %v299, %v303
    %v306 = vadd.f32 %v296, %v304
    %307 = vst [vmem:[#allocation2] sm:$0xff] %v306
    // Predicated region
    $region22: #{tpu_custom_call.1} parent=1 // pred_check
      _
    $region23: #{tpu_custom_call.1} parent=1 // pred_check_branch
      %309 = sbr.rel (0) target = $region25
    $region24: #{tpu_custom_call.1} parent=1 // pred_region
      %s311 = ssub.s32 128, 128
      %312 = vsyncadd [#allocation3], %s311
      %s314 = sshll.u32 [#allocation2], 4
      %s315 = int_to_ptr.vmem [resolvable:$true] %s314
      %317 = dma.vmem_to_hbm [thread:$0]  %s315, 128, %s5, [#allocation3]
    $region25: #{tpu_custom_call.1} parent=1 // pred_fallthru
      _
    // Predicated region
    $region26: #{tpu_custom_call.1} parent=1 // pred_check
      _
    $region27: #{tpu_custom_call.1} parent=1 // pred_check_branch
      %319 = sbr.rel (0) target = $region29
    $region28: #{tpu_custom_call.1} parent=1 // pred_region
      %320 = dma.done [#allocation3], 128
    $region29: #{tpu_custom_call.1} parent=1 // pred_fallthru
      _
    %321 = vsyncpa [#allocation3], 1

</llo_original>
